<compile_context>
chip_gen: v5e
topology: v5e:2x2
jax: 0.10.0
libtpu: 0.0.40
codegen_flags: <defaults>
</compile_context>

<pallas_src>
import functools

import jax
import jax.numpy as jnp
from jax.experimental import pallas as pl
from jax.experimental.pallas import tpu as pltpu


COMPUTE_DTYPE = jnp.bfloat16  # MXU operand dtype; accumulation is always f32.


def _fused_gcn3_kernel(d_in, d_inter, d_out,
                       lt_ref, xt_ref, w_ref, b_ref, o_ref):
    """Fused 3-layer GCN forward in feature-major (transposed) layout.

    lt_ref : [N, N]                        f32   L^T
    xt_ref : [d_in, N]                     f32   X^T
    w_ref  : [d_inter, d_in + 2*d_inter]   f32   [W1 | W2 | W3], PyTorch [out, in]
    b_ref  : [d_inter, 3]                  f32   column j = bias of layer j (padded)
    o_ref  : [d_out, N]                    f32   Y^T
    """
    lt = lt_ref[...].astype(COMPUTE_DTYPE)          # [N, N] bf16, reused by all 3 layers

    w_all = w_ref[...]
    b_all = b_ref[...]
    w1 = w_all[:, :d_in].astype(COMPUTE_DTYPE)                              # [16, 32]
    w2 = w_all[:, d_in:d_in + d_inter].astype(COMPUTE_DTYPE)                # [16, 16]
    w3 = w_all[:d_out, d_in + d_inter:d_in + 2 * d_inter].astype(COMPUTE_DTYPE)  # [8, 16]
    b1 = b_all[:, 0:1]                                                      # [16, 1]
    b2 = b_all[:, 1:2]                                                      # [16, 1]
    b3 = b_all[:d_out, 2:3]                                                 # [8, 1]

    def layer(ht, w, b, relu):
        # Normal layout:         y   = (L @ h) @ W^T + b      (nn.Linear applied to L@h)
        # Transposed + reassoc:  y^T = (W @ h^T) @ L^T + b[:, None]
        # Weight matmul first (shrinks row count), big L^T matmul second so the
        # dominant dot is [d_out, 128] @ [128, 128] with a full 128-lane result.
        wh = jnp.dot(w, ht, preferred_element_type=jnp.float32)             # [do, N] f32
        y = jnp.dot(wh.astype(COMPUTE_DTYPE), lt,
                    preferred_element_type=jnp.float32) + b                 # [do, N] f32
        if relu:
            y = jnp.maximum(y, 0.0)                                         # f32 epilogue
        return y

    h0 = xt_ref[...].astype(COMPUTE_DTYPE)                                  # [d_in, N]
    h1 = layer(h0, w1, b1, relu=True).astype(COMPUTE_DTYPE)                 # [16, N]
    h2 = layer(h1, w2, b2, relu=True).astype(COMPUTE_DTYPE)                 # [16, N]
    o_ref[...] = layer(h2, w3, b3, relu=False).astype(o_ref.dtype)          # [d_out, N]


def pack_params(params):
    """Pack [(W1,b1),(W2,b2),(W3,b3)] (W in PyTorch [out, in] layout) into two
    small padded f32 buffers.  Call ONCE per model (weights are static), so the
    packing cost never sits on the per-forward path."""
    (W1, b1), (W2, b2), (W3, b3) = params
    d_inter, d_in = W1.shape
    d_out = W3.shape[0]
    assert W2.shape == (d_inter, d_inter) and W3.shape == (d_out, d_inter)
    assert d_out <= d_inter

    w_pack = jnp.zeros((d_inter, d_in + 2 * d_inter), jnp.float32)
    w_pack = w_pack.at[:, :d_in].set(W1.astype(jnp.float32))
    w_pack = w_pack.at[:, d_in:d_in + d_inter].set(W2.astype(jnp.float32))
    w_pack = w_pack.at[:d_out, d_in + d_inter:].set(W3.astype(jnp.float32))

    b_pack = jnp.zeros((d_inter, 3), jnp.float32)
    b_pack = b_pack.at[:, 0].set(b1.astype(jnp.float32))
    b_pack = b_pack.at[:, 1].set(b2.astype(jnp.float32))
    b_pack = b_pack.at[:d_out, 2].set(b3.astype(jnp.float32))

    return w_pack, b_pack, (d_in, d_inter, d_out)


def simple_gcn_forward(X, L, w_pack, b_pack, dims):
    """X: [N, d_in] f32, L: [N, N] f32.  Returns f32 [N, d_out]."""
    d_in, d_inter, d_out = dims
    N = X.shape[0]

    # Layout plumbing only: feature-major views so N sits on the lane axis for
    # every tensor inside the kernel.  bf16 casting happens in-kernel.
    lt = jnp.transpose(L).astype(jnp.float32)      # [N, N]
    xt = jnp.transpose(X).astype(jnp.float32)      # [d_in, N]

    flops = 0
    for di, do in ((d_in, d_inter), (d_inter, d_inter), (d_inter, d_out)):
        flops += 2 * (do * di * N + do * N * N)
    bytes_accessed = 4 * (lt.size + xt.size + w_pack.size + b_pack.size + d_out * N)

    vmem = pl.BlockSpec(memory_space=pltpu.MemorySpace.VMEM)
    out_t = pl.pallas_call(
        functools.partial(_fused_gcn3_kernel, d_in, d_inter, d_out),
        out_shape=jax.ShapeDtypeStruct((d_out, N), jnp.float32),
        in_specs=[vmem, vmem, vmem, vmem],
        out_specs=vmem,
        cost_estimate=pl.CostEstimate(flops=flops, transcendentals=0,
                                      bytes_accessed=bytes_accessed),
    )(lt, xt, w_pack, b_pack)

    return jnp.transpose(out_t)                    # [N, d_out]


def init_linear(key, d_in, d_out, dtype=jnp.float32):
    """Mirrors nn.Linear's uniform(-1/sqrt(d_in), 1/sqrt(d_in)) init.
    W is returned in PyTorch [out, in] layout."""
    kw, kb = jax.random.split(key)
    bound = 1.0 / jnp.sqrt(jnp.float32(d_in))
    W = jax.random.uniform(kw, (d_out, d_in), dtype, -bound, bound)
    b = jax.random.uniform(kb, (d_out,), dtype, -bound, bound)
    return W, b


def _ref_forward_f32(X, L, params):
    """Exact original (f32) semantics: per Linear layer, X = (L @ X) @ W^T + b."""
    h = X
    n = len(params)
    for idx, (W, b) in enumerate(params):
        h = (L @ h) @ W.T + b
        if idx < n - 1:
            h = jnp.maximum(h, 0.0)
    return h


def _ref_forward_mixed(X, L, params):
    """XLA emulation of the kernel's exact mixed-precision, transposed arithmetic."""
    lt = jnp.transpose(L).astype(COMPUTE_DTYPE)
    ht = jnp.transpose(X).astype(COMPUTE_DTYPE)
    n = len(params)
    y = None
    for idx, (W, b) in enumerate(params):
        wh = jnp.dot(W.astype(COMPUTE_DTYPE), ht, preferred_element_type=jnp.float32)
        y = jnp.dot(wh.astype(COMPUTE_DTYPE), lt,
                    preferred_element_type=jnp.float32) + b[:, None]
        if idx < n - 1:
            y = jnp.maximum(y, 0.0)
        ht = y.astype(COMPUTE_DTYPE)
    return jnp.transpose(y)


if __name__ == "__main__":
    # Small synthetic problem consistent with the module's forward:
    # N nodes, d_in input feats, d_inter=16 hidden, d_out classes, n_layers=2
    # (-> 3 Linear layers, 2 ReLUs, dropout=0 so no Dropout layer).
    N, d_in, d_inter, d_out = 128, 32, 16, 8

    key = jax.random.PRNGKey(0)
    kx, kl, k1, k2, k3 = jax.random.split(key, 5)

    # Node features X: [N, d_in]
    X = jax.random.normal(kx, (N, d_in), jnp.float32)

    # Graph operator L: [N, N] row-normalized random adjacency with self loops.
    A = (jax.random.uniform(kl, (N, N)) < 0.1).astype(jnp.float32)
    A = A + jnp.eye(N, dtype=jnp.float32)
    L = A / jnp.sum(A, axis=1, keepdims=True)

    params = [
        init_linear(k1, d_in, d_inter),
        init_linear(k2, d_inter, d_inter),
        init_linear(k3, d_inter, d_out),
    ]
    w_pack, b_pack, dims = pack_params(params)   # once, off the per-call path

    out = simple_gcn_forward(X, L, w_pack, b_pack, dims)
    out = jax.block_until_ready(out)
    assert out.shape == (N, d_out)

    # 1) Loose check vs. exact original f32 semantics (bounds bf16 input
    #    quantization + reassociation error; catches structural bugs).
    ref_f32 = _ref_forward_f32(X, L, params)
    assert jnp.allclose(out, ref_f32, atol=2e-2, rtol=2e-2), \
        float(jnp.max(jnp.abs(out - ref_f32)))

    # 2) Tight check vs. an XLA emulation of the kernel's exact mixed-precision,
    #    transposed arithmetic (bf16 MXU operands, f32 accumulation).
    ref_mixed = _ref_forward_mixed(X, L, params)
    assert jnp.allclose(out, ref_mixed, atol=1e-3, rtol=1e-3), \
        float(jnp.max(jnp.abs(out - ref_mixed)))

    print("KERNEL_OK")
</pallas_src>

<mosaic_0001>
module attributes {stable_mosaic.version = 11 : i64} {
  func.func @_fused_gcn3_kernel(%arg0: memref<128x128xf32, #tpu.memory_space<vmem>>, %arg1: memref<32x128xf32, #tpu.memory_space<vmem>>, %arg2: memref<16x64xf32, #tpu.memory_space<vmem>>, %arg3: memref<16x3xf32, #tpu.memory_space<vmem>>, %arg4: memref<8x128xf32, #tpu.memory_space<vmem>>) attributes {dimension_semantics = [], scalar_prefetch = 0 : i64, scratch_operands = 0 : i64, tpu.core_type = #tpu.core_type<tc>} {
    %c0 = arith.constant 0 : index
    %c0_0 = arith.constant 0 : index
    %0 = vector.load %arg0[%c0, %c0_0] : memref<128x128xf32, #tpu.memory_space<vmem>>, vector<128x128xf32>
    %1 = arith.truncf %0 : vector<128x128xf32> to vector<128x128xbf16>
    %c0_1 = arith.constant 0 : index
    %c0_2 = arith.constant 0 : index
    %2 = vector.load %arg2[%c0_1, %c0_2] : memref<16x64xf32, #tpu.memory_space<vmem>>, vector<16x64xf32>
    %c0_3 = arith.constant 0 : index
    %c0_4 = arith.constant 0 : index
    %3 = vector.load %arg3[%c0_3, %c0_4] : memref<16x3xf32, #tpu.memory_space<vmem>>, vector<16x3xf32>
    %4 = vector.extract_strided_slice %2 {offsets = [0, 0], sizes = [16, 32], strides = [1, 1]} : vector<16x64xf32> to vector<16x32xf32>
    %5 = arith.truncf %4 : vector<16x32xf32> to vector<16x32xbf16>
    %6 = vector.extract_strided_slice %2 {offsets = [0, 32], sizes = [16, 16], strides = [1, 1]} : vector<16x64xf32> to vector<16x16xf32>
    %7 = arith.truncf %6 : vector<16x16xf32> to vector<16x16xbf16>
    %8 = vector.extract_strided_slice %2 {offsets = [0, 48], sizes = [8, 16], strides = [1, 1]} : vector<16x64xf32> to vector<8x16xf32>
    %9 = arith.truncf %8 : vector<8x16xf32> to vector<8x16xbf16>
    %10 = vector.extract_strided_slice %3 {offsets = [0, 0], sizes = [16, 1], strides = [1, 1]} : vector<16x3xf32> to vector<16x1xf32>
    %11 = vector.extract_strided_slice %3 {offsets = [0, 1], sizes = [16, 1], strides = [1, 1]} : vector<16x3xf32> to vector<16x1xf32>
    %12 = vector.extract_strided_slice %3 {offsets = [0, 2], sizes = [8, 1], strides = [1, 1]} : vector<16x3xf32> to vector<8x1xf32>
    %c0_5 = arith.constant 0 : index
    %c0_6 = arith.constant 0 : index
    %13 = vector.load %arg1[%c0_5, %c0_6] : memref<32x128xf32, #tpu.memory_space<vmem>>, vector<32x128xf32>
    %14 = arith.truncf %13 : vector<32x128xf32> to vector<32x128xbf16>
    %cst = arith.constant dense<0.000000e+00> : vector<16x128xf32>
    %15 = tpu.matmul %5, %14, %cst {dimension_numbers = #tpu.dot_dimension_numbers<[1], [0], [0], [1], [0, 0, 1, 1], [], []>} : vector<16x32xbf16>, vector<32x128xbf16>, vector<16x128xf32> -> vector<16x128xf32>
    %16 = arith.truncf %15 : vector<16x128xf32> to vector<16x128xbf16>
    %cst_7 = arith.constant dense<0.000000e+00> : vector<16x128xf32>
    %17 = tpu.matmul %16, %1, %cst_7 {dimension_numbers = #tpu.dot_dimension_numbers<[1], [0], [0], [1], [0, 0, 1, 1], [], []>} : vector<16x128xbf16>, vector<128x128xbf16>, vector<16x128xf32> -> vector<16x128xf32>
    %18 = vector.broadcast %10 : vector<16x1xf32> to vector<16x128xf32>
    %19 = arith.addf %17, %18 : vector<16x128xf32>
    %cst_8 = arith.constant 0.000000e+00 : f32
    %20 = vector.broadcast %cst_8 : f32 to vector<16x128xf32>
    %21 = arith.maximumf %19, %20 : vector<16x128xf32>
    %22 = arith.truncf %21 : vector<16x128xf32> to vector<16x128xbf16>
    %cst_9 = arith.constant dense<0.000000e+00> : vector<16x128xf32>
    %23 = tpu.matmul %7, %22, %cst_9 {dimension_numbers = #tpu.dot_dimension_numbers<[1], [0], [0], [1], [0, 0, 1, 1], [], []>} : vector<16x16xbf16>, vector<16x128xbf16>, vector<16x128xf32> -> vector<16x128xf32>
    %24 = arith.truncf %23 : vector<16x128xf32> to vector<16x128xbf16>
    %cst_10 = arith.constant dense<0.000000e+00> : vector<16x128xf32>
    %25 = tpu.matmul %24, %1, %cst_10 {dimension_numbers = #tpu.dot_dimension_numbers<[1], [0], [0], [1], [0, 0, 1, 1], [], []>} : vector<16x128xbf16>, vector<128x128xbf16>, vector<16x128xf32> -> vector<16x128xf32>
    %26 = vector.broadcast %11 : vector<16x1xf32> to vector<16x128xf32>
    %27 = arith.addf %25, %26 : vector<16x128xf32>
    %cst_11 = arith.constant 0.000000e+00 : f32
    %28 = vector.broadcast %cst_11 : f32 to vector<16x128xf32>
    %29 = arith.maximumf %27, %28 : vector<16x128xf32>
    %30 = arith.truncf %29 : vector<16x128xf32> to vector<16x128xbf16>
    %cst_12 = arith.constant dense<0.000000e+00> : vector<8x128xf32>
    %31 = tpu.matmul %9, %30, %cst_12 {dimension_numbers = #tpu.dot_dimension_numbers<[1], [0], [0], [1], [0, 0, 1, 1], [], []>} : vector<8x16xbf16>, vector<16x128xbf16>, vector<8x128xf32> -> vector<8x128xf32>
    %32 = arith.truncf %31 : vector<8x128xf32> to vector<8x128xbf16>
    %cst_13 = arith.constant dense<0.000000e+00> : vector<8x128xf32>
    %33 = tpu.matmul %32, %1, %cst_13 {dimension_numbers = #tpu.dot_dimension_numbers<[1], [0], [0], [1], [0, 0, 1, 1], [], []>} : vector<8x128xbf16>, vector<128x128xbf16>, vector<8x128xf32> -> vector<8x128xf32>
    %34 = vector.broadcast %12 : vector<8x1xf32> to vector<8x128xf32>
    %35 = arith.addf %33, %34 : vector<8x128xf32>
    %c0_14 = arith.constant 0 : index
    %c0_15 = arith.constant 0 : index
    %36 = vector.load %arg4[%c0_14, %c0_15] : memref<8x128xf32, #tpu.memory_space<vmem>>, vector<8x128xf32>
    tpu.vector_store %arg4[%c0_14, %c0_15], %35 {strides = array<i32>} : memref<8x128xf32, #tpu.memory_space<vmem>>, vector<8x128xf32>,
    return
  }
}

</mosaic_0001>

<llo_original>
// kernel: tpu_custom_call.1
$region0: #{tpu_custom_call.1}
  #allocation0 [shape = 'u32[]', space=smem, size = 0x4, offset = 0x4, fixed_abs, tag = 'smem constant byte address 0x4 - core index']
  #allocation1 [shape = 'u32[72,128]{1,0:T(1,128)}', space=vmem, size = 0x9000, scoped, tag = 'internal scratch']
  %s0 = inlined_call_operand.hbm [shape: f32[128,128], index: 0, kind: input, shape index: {}]
  %s1 = inlined_call_operand.hbm [shape: f32[32,128], index: 1, kind: input, shape index: {}]
  %s2 = inlined_call_operand.vmem [shape: f32[16,64], index: 2, kind: input, shape index: {}]
  %s3 = inlined_call_operand.vmem [shape: f32[16,3], index: 3, kind: input, shape index: {}]
  %s4 = inlined_call_operand.hbm [shape: f32[8,128], index: 4, kind: output, shape index: {}]
  %s5 = sld [smem:[#allocation0]]
  $region34: #{tpu_custom_call.1} parent=0
    _
  %s7 = ssub.s32 1, %s5
  %s8 = scalar_select 0, %s7, %s5
  $region1: #{tpu_custom_call.1} parent=0
    #allocation2 [shape = 'u8[65536]{0}', space=vmem, size = 0x10000, scoped, tag = 'input window, operand 0, single buffered']
    #allocation3 [shape = 's32[1]{0}', space=sflag, size = 0x4, scoped, tag = 'scoped memory for tpu_custom_call.1']
    #allocation4 [shape = 's32[1]{0}', space=sflag, size = 0x4, scoped, tag = 'scoped memory for tpu_custom_call.1']
    #allocation5 [shape = 'u8[16384]{0}', space=vmem, size = 0x4000, scoped, tag = 'input window, operand 1, single buffered']
    #allocation6 [shape = 's32[1]{0}', space=sflag, size = 0x4, scoped, tag = 'scoped memory for tpu_custom_call.1']
    #allocation7 [shape = 'u8[4096]{0}', space=vmem, size = 0x1000, scoped, tag = 'output window, operand 0, single buffered']
    %9 = vsyncpa [#allocation3], 0
    %10 = vsyncpa [#allocation6], 0
    %11 = vsyncpa [#allocation4], 0
    // Predicated region
    $region2: #{tpu_custom_call.1} parent=1 // pred_check
      _
    $region3: #{tpu_custom_call.1} parent=1 // pred_check_branch
      %13 = sbr.rel (0) target = $region5
    $region4: #{tpu_custom_call.1} parent=1 // pred_region
      %15 = vsyncadd [#allocation3], 0
      %s16 = sshll.u32 %s0, 4
      %s17 = int_to_ptr.hbm [resolvable:$true] %s16
      %s18 = sshll.u32 [#allocation2], 4
      %s19 = int_to_ptr.vmem [resolvable:$true] %s18
      %24 = dma.hbm_to_vmem [thread:$0]  %s17, 2048, %s19, [#allocation3], 128, 128, 8
    $region5: #{tpu_custom_call.1} parent=1 // pred_fallthru
      _
    // Predicated region
    $region6: #{tpu_custom_call.1} parent=1 // pred_check
      _
    $region7: #{tpu_custom_call.1} parent=1 // pred_check_branch
      %26 = sbr.rel (0) target = $region9
    $region8: #{tpu_custom_call.1} parent=1 // pred_region
      %28 = vsyncadd [#allocation6], 0
      %s29 = sshll.u32 %s1, 4
      %s30 = int_to_ptr.hbm [resolvable:$true] %s29
      %s31 = sshll.u32 [#allocation5], 4
      %s32 = int_to_ptr.vmem [resolvable:$true] %s31
      %37 = dma.hbm_to_vmem [thread:$0]  %s30, 512, %s32, [#allocation6], 128, 128, 8
    $region9: #{tpu_custom_call.1} parent=1 // pred_fallthru
      _
    // Predicated region
    $region10: #{tpu_custom_call.1} parent=1 // pred_check
      _
    $region11: #{tpu_custom_call.1} parent=1 // pred_check_branch
      %39 = sbr.rel (0) target = $region13
    $region12: #{tpu_custom_call.1} parent=1 // pred_region
      _
    $region13: #{tpu_custom_call.1} parent=1 // pred_fallthru
      _
    // Predicated region
    $region14: #{tpu_custom_call.1} parent=1 // pred_check
      _
    $region15: #{tpu_custom_call.1} parent=1 // pred_check_branch
      %41 = sbr.rel (0) target = $region17
    $region16: #{tpu_custom_call.1} parent=1 // pred_region
      _
    $region17: #{tpu_custom_call.1} parent=1 // pred_fallthru
      _
    // Predicated region
    $region18: #{tpu_custom_call.1} parent=1 // pred_check
      _
    $region19: #{tpu_custom_call.1} parent=1 // pred_check_branch
      %43 = sbr.rel (0) target = $region21
    $region20: #{tpu_custom_call.1} parent=1 // pred_region
      %45 = dma.done [#allocation3], 2048
    $region21: #{tpu_custom_call.1} parent=1 // pred_fallthru
      _
    // Predicated region
    $region22: #{tpu_custom_call.1} parent=1 // pred_check
      _
    $region23: #{tpu_custom_call.1} parent=1 // pred_check_branch
      %47 = sbr.rel (0) target = $region25
    $region24: #{tpu_custom_call.1} parent=1 // pred_region
      %49 = dma.done [#allocation6], 512
    $region25: #{tpu_custom_call.1} parent=1 // pred_fallthru
      _
    %v51 = vld [vmem:[#allocation2] sm:$0xff]
    %v52 = vld [vmem:[#allocation2 + $0x8] sm:$0xff]
    %v53 = vld [vmem:[#allocation2 + $0x10] sm:$0xff]
    %v54 = vld [vmem:[#allocation2 + $0x18] sm:$0xff]
    %v55 = vld [vmem:[#allocation2 + $0x20] sm:$0xff]
    %v56 = vld [vmem:[#allocation2 + $0x28] sm:$0xff]
    %v57 = vld [vmem:[#allocation2 + $0x30] sm:$0xff]
    %v58 = vld [vmem:[#allocation2 + $0x38] sm:$0xff]
    %v59 = vld [vmem:[#allocation2 + $0x40] sm:$0xff]
    %v60 = vld [vmem:[#allocation2 + $0x48] sm:$0xff]
    %v61 = vld [vmem:[#allocation2 + $0x50] sm:$0xff]
    %v62 = vld [vmem:[#allocation2 + $0x58] sm:$0xff]
    %v63 = vld [vmem:[#allocation2 + $0x60] sm:$0xff]
    %v64 = vld [vmem:[#allocation2 + $0x68] sm:$0xff]
    %v65 = vld [vmem:[#allocation2 + $0x70] sm:$0xff]
    %v66 = vld [vmem:[#allocation2 + $0x78] sm:$0xff]
    %v67 = vpack.c.bf16 %v52, %v51
    %v68 = vpack.c.bf16 %v54, %v53
    %v69 = vpack.c.bf16 %v56, %v55
    %v70 = vpack.c.bf16 %v58, %v57
    %v71 = vpack.c.bf16 %v60, %v59
    %v72 = vpack.c.bf16 %v62, %v61
    %v73 = vpack.c.bf16 %v64, %v63
    %v74 = vpack.c.bf16 %v66, %v65
    %v75 = vld [vmem:[%s2] sm:$0xff]
    %v76 = vld [vmem:[%s2 + $0x8] sm:$0xff]
    %v77 = vld [vmem:[%s3] sm:$0xff]
    %v78 = vld [vmem:[%s3 + $0x8] sm:$0xff]
    %v79 = vpack.c.bf16 %v76, %v75
    %v80 = vpack.c.bf16 %v75, %v75
    %v81 = vld [vmem:[#allocation5] sm:$0xff]
    %v82 = vld [vmem:[#allocation5 + $0x8] sm:$0xff]
    %v83 = vld [vmem:[#allocation5 + $0x10] sm:$0xff]
    %v84 = vld [vmem:[#allocation5 + $0x18] sm:$0xff]
    %v85 = vpack.c.bf16 %v82, %v81
    %v86 = vpack.c.bf16 %v84, %v83
    %vm87 = vcmask 261120
    %v89 = vsel %vm87, %v79, 0
    %91 = vmatpush.bf16.msra.mxu0 0
    %92 = vmatpush.bf16.msra.mxu0 0
    %93 = vmatpush.bf16.msra.mxu0 0
    %94 = vmatpush.bf16.msra.mxu0 0
    %95 = vmatpush.bf16.msra.mxu0 0
    %96 = vmatpush.bf16.msra.mxu0 0
    %97 = vmatpush.bf16.msra.mxu0 %v86
    %98 = vmatpush.bf16.msra.mxu0 %v85
    %99 = vmatmul.bf16.gmra.mxu0 %v89
    %v100 = vpop.f32.mrf.mxu0
    %v101 = vadd.f32 0.0, %v100
    %v102 = vpop.f32.mrf.mxu0
    %v103 = vadd.f32 0.0, %v102
    %104 = vdwg.mxu0
    %v105 = vpack.c.bf16 %v103, %v101
    %107 = vset.pattern.permute.xlu0 0
    %108 = vperm.xlu0 %107, %v77
    %v109 = vpop.permute.xlu0 %108
    %112 = vset.pattern.permute.xlu0 0
    %113 = vperm.xlu0 %112, %v78
    %v114 = vpop.permute.xlu0 %113
    %116 = vmatpush.bf16.msra.mxu0 %v74
    %117 = vmatpush.bf16.msra.mxu0 %v73
    %118 = vmatpush.bf16.msra.mxu0 %v72
    %119 = vmatpush.bf16.msra.mxu0 %v71
    %120 = vmatpush.bf16.msra.mxu0 %v70
    %121 = vmatpush.bf16.msra.mxu0 %v69
    %122 = vmatpush.bf16.msra.mxu0 %v68
    %123 = vmatpush.bf16.msra.mxu0 %v67
    %124 = vmatmul.bf16.gmra.mxu0 %v105
    %v125 = vpop.f32.mrf.mxu0
    %v126 = vadd.f32 %v109, %v125
    %v127 = vpop.f32.mrf.mxu0
    %v128 = vadd.f32 %v114, %v127
    %129 = vdwg.mxu0
    %v130 = vmax.f32 %v126, 0.0
    %v131 = vmax.f32 %v128, 0.0
    %v132 = vpack.c.bf16 %v131, %v130
    %134 = vrot.lane.b32.xlu0 %v79, 96
    %v135 = vpop.permute.xlu0 %134
    %vm136 = vcmask 130048
    %v138 = vsel %vm136, %v135, 0
    %140 = vmatpush.bf16.msra.mxu0 0
    %141 = vmatpush.bf16.msra.mxu0 0
    %142 = vmatpush.bf16.msra.mxu0 0
    %143 = vmatpush.bf16.msra.mxu0 0
    %144 = vmatpush.bf16.msra.mxu0 0
    %145 = vmatpush.bf16.msra.mxu0 0
    %146 = vmatpush.bf16.msra.mxu0 0
    %147 = vmatpush.bf16.msra.mxu0 %v132
    %148 = vmatmul.bf16.gmra.mxu0 %v138
    %v149 = vpop.f32.mrf.mxu0
    %v150 = vadd.f32 0.0, %v149
    %v151 = vpop.f32.mrf.mxu0
    %v152 = vadd.f32 0.0, %v151
    %153 = vdwg.mxu0
    %v154 = vpack.c.bf16 %v152, %v150
    %155 = vset.pattern.permute.xlu0 1
    %156 = vperm.xlu0 %155, %v77
    %v157 = vpop.permute.xlu0 %156
    %159 = vset.pattern.permute.xlu0 1
    %160 = vperm.xlu0 %159, %v78
    %v161 = vpop.permute.xlu0 %160
    %163 = vmatpush.bf16.msra.mxu0 %v74
    %164 = vmatpush.bf16.msra.mxu0 %v73
    %165 = vmatpush.bf16.msra.mxu0 %v72
    %166 = vmatpush.bf16.msra.mxu0 %v71
    %167 = vmatpush.bf16.msra.mxu0 %v70
    %168 = vmatpush.bf16.msra.mxu0 %v69
    %169 = vmatpush.bf16.msra.mxu0 %v68
    %170 = vmatpush.bf16.msra.mxu0 %v67
    %171 = vmatmul.bf16.gmra.mxu0 %v154
    %v172 = vpop.f32.mrf.mxu0
    %v173 = vadd.f32 %v157, %v172
    %v174 = vpop.f32.mrf.mxu0
    %v175 = vadd.f32 %v161, %v174
    %176 = vdwg.mxu0
    %v177 = vmax.f32 %v173, 0.0
    %v178 = vmax.f32 %v175, 0.0
    %v179 = vpack.c.bf16 %v178, %v177
    %181 = vrot.lane.b32.xlu0 %v80, 80
    %v182 = vpop.permute.xlu0 %181
    %v184 = vsel %vm136, %v182, 0
    %186 = vmatpush.bf16.msra.mxu0 0
    %187 = vmatpush.bf16.msra.mxu0 0
    %188 = vmatpush.bf16.msra.mxu0 0
    %189 = vmatpush.bf16.msra.mxu0 0
    %190 = vmatpush.bf16.msra.mxu0 0
    %191 = vmatpush.bf16.msra.mxu0 0
    %192 = vmatpush.bf16.msra.mxu0 0
    %193 = vmatpush.bf16.msra.mxu0 %v179
    %194 = vmatmul.bf16.gmra.mxu0 %v184
    %v195 = vpop.f32.mrf.mxu0
    %v196 = vadd.f32 0.0, %v195
    %v197 = vpop.f32.mrf.mxu0
    %198 = vdwg.mxu0
    %v199 = vpack.c.bf16 %v196, %v196
    %200 = vset.pattern.permute.xlu0 2
    %201 = vperm.xlu0 %200, %v77
    %v202 = vpop.permute.xlu0 %201
    %204 = vmatpush.bf16.msra.mxu0 %v74
    %205 = vmatpush.bf16.msra.mxu0 %v73
    %206 = vmatpush.bf16.msra.mxu0 %v72
    %207 = vmatpush.bf16.msra.mxu0 %v71
    %208 = vmatpush.bf16.msra.mxu0 %v70
    %209 = vmatpush.bf16.msra.mxu0 %v69
    %210 = vmatpush.bf16.msra.mxu0 %v68
    %211 = vmatpush.bf16.msra.mxu0 %v67
    %212 = vmatmul.bf16.gmra.mxu0 %v199
    %v213 = vpop.f32.mrf.mxu0
    %v214 = vadd.f32 %v202, %v213
    %v215 = vpop.f32.mrf.mxu0
    %216 = vdwg.mxu0
    %217 = vst [vmem:[#allocation7] sm:$0xff] %v214
    // Predicated region
    $region26: #{tpu_custom_call.1} parent=1 // pred_check
      _
    $region27: #{tpu_custom_call.1} parent=1 // pred_check_branch
      %219 = sbr.rel (0) target = $region29
    $region28: #{tpu_custom_call.1} parent=1 // pred_region
      %221 = vsyncadd [#allocation4], 0
      %s223 = sshll.u32 [#allocation7], 4
      %s224 = int_to_ptr.vmem [resolvable:$true] %s223
      %s225 = sshll.u32 %s4, 4
      %s226 = int_to_ptr.hbm [resolvable:$true] %s225
      %228 = dma.vmem_to_hbm [thread:$0]  %s224, 128, %s226, [#allocation4]
    $region29: #{tpu_custom_call.1} parent=1 // pred_fallthru
      _
    // Predicated region
    $region30: #{tpu_custom_call.1} parent=1 // pred_check
      _
    $region31: #{tpu_custom_call.1} parent=1 // pred_check_branch
      %230 = sbr.rel (0) target = $region33
    $region32: #{tpu_custom_call.1} parent=1 // pred_region
      %232 = dma.done [#allocation4], 128
    $region33: #{tpu_custom_call.1} parent=1 // pred_fallthru
      _
    %233 = vsyncpa [#allocation3], 1
    %234 = vsyncpa [#allocation6], 1
    %235 = vsyncpa [#allocation4], 1

</llo_original>
